<compile_context>
chip_gen: v5e
topology: v5e:2x2
jax: 0.10.0
libtpu: 0.0.40
codegen_flags: <defaults>
</compile_context>

<pallas_src>
import math

import jax
import jax.numpy as jnp
from jax.experimental import pallas as pl
from jax.experimental.pallas import tpu as pltpu


def _eca_kernel(x_ref, m_ref, o_ref):
    # x_ref: VMEM (Bt, C, HW) input block (input dtype, f32 or bf16).
    # m_ref: VMEM (C, C) f32 banded conv matrix; m_ref[i, o] is the Conv1d
    #        weight mapping pooled channel i -> gated channel o (zero-padded
    #        taps already folded in).  Constant index_map -> fetched once.
    # o_ref: VMEM (Bt, C, HW) output block.
    x = x_ref[...]                                            # (Bt, C, HW)

    # AdaptiveAvgPool2d(1): mean over the (flattened) spatial lane axis.
    y = jnp.mean(x.astype(jnp.float32), axis=-1)              # (Bt, C)

    # k-tap zero-padded channel conv == one tiny MXU matmul with the banded
    # matrix (MXU is idle in this kernel, so this is effectively free).
    conv = jnp.dot(y, m_ref[...], preferred_element_type=jnp.float32)  # (Bt, C)
    scale = jax.nn.sigmoid(conv)                              # (Bt, C) f32

    # Multiply in f32, cast once on store (bf16-safe); lane-dense store.
    o_ref[...] = (x.astype(jnp.float32) * scale[:, :, None]).astype(o_ref.dtype)


def _banded_conv_matrix(weight, channels, k_size):
    """(C, C) f32 matrix M with M[i, o] = w[j] where i == o + j - pad (else 0).

    conv[b, o] = sum_i y[b, i] * M[i, o] reproduces the zero-padded
    Conv1d(1, 1, k_size, bias=False) across the channel axis (odd k_size).
    """
    pad = (k_size - 1) // 2
    i_idx = jnp.arange(channels)[:, None]     # pooled (input) channel
    o_idx = jnp.arange(channels)[None, :]     # gated (output) channel
    m = jnp.zeros((channels, channels), jnp.float32)
    for j in range(k_size):                   # k_size is static and tiny
        m = m + jnp.where(i_idx == o_idx + (j - pad),
                          weight[j].astype(jnp.float32), 0.0)
    return m


def _pick_batch_tile(batch, per_batch_bytes, target_bytes=2 * 1024 * 1024):
    """Largest divisor of `batch` whose block stays under ~target_bytes."""
    bt = max(1, min(batch, target_bytes // max(per_batch_bytes, 1)))
    while batch % bt:
        bt -= 1
    return bt


def eca_forward(x, weight, k_size=3):
    """x: (B, C, H, W); weight: (k_size,) Conv1d(1,1,k_size, bias=False) taps."""
    B, C, H, W = x.shape
    HW = H * W
    x2 = x.reshape(B, C, HW)

    m = _banded_conv_matrix(weight, C, k_size)                # (C, C) f32

    bt = _pick_batch_tile(B, C * HW * x.dtype.itemsize)
    grid = (B // bt,)

    out = pl.pallas_call(
        _eca_kernel,
        out_shape=jax.ShapeDtypeStruct((B, C, HW), x.dtype),
        grid_spec=pltpu.PrefetchScalarGridSpec(
            num_scalar_prefetch=0,
            grid=grid,
            in_specs=[
                # Input slab: Bt batch elements per step; C and HW are the
                # full array extents, HW is a multiple of 128 (lane-dense).
                pl.BlockSpec((bt, C, HW), lambda b: (b, 0, 0)),
                # Banded conv matrix: constant block index -> DMA'd once.
                pl.BlockSpec((C, C), lambda b: (0, 0)),
            ],
            out_specs=pl.BlockSpec((bt, C, HW), lambda b: (b, 0, 0)),
        ),
        compiler_params=pltpu.CompilerParams(
            dimension_semantics=("parallel",)),
    )(x2, m)
    return out.reshape(B, C, H, W)


def eca_reference(x, weight, k_size=3):
    """Pure-JAX reference mirroring the PyTorch eca_layer.forward."""
    B, C, H, W = x.shape
    pad = (k_size - 1) // 2
    y = x.astype(jnp.float32).mean(axis=(2, 3))               # (B, C)
    y_pad = jnp.pad(y, ((0, 0), (pad, pad)))
    conv = sum(weight[j].astype(jnp.float32) * y_pad[:, j:j + C]
               for j in range(k_size))
    scale = jax.nn.sigmoid(conv)                              # (B, C)
    return (x.astype(jnp.float32) * scale[:, :, None, None]).astype(x.dtype)


if __name__ == "__main__":
    key = jax.random.PRNGKey(0)
    kx, kw = jax.random.split(key)

    B, C, H, W = 2, 4, 16, 16
    k_size = 3

    x = jax.random.normal(kx, (B, C, H, W), dtype=jnp.float32)
    # Deterministic Conv1d(1, 1, k_size, bias=False) weight (kaiming-uniform-ish).
    bound = 1.0 / math.sqrt(float(k_size))
    weight = jax.random.uniform(kw, (k_size,), minval=-bound, maxval=bound,
                                dtype=jnp.float32)

    out = eca_forward(x, weight, k_size=k_size)
    out = jax.block_until_ready(out)

    ref = eca_reference(x, weight, k_size=k_size)
    assert out.shape == x.shape
    assert jnp.allclose(out, ref, atol=1e-5, rtol=1e-4), "mismatch vs reference"

    print("KERNEL_OK")
</pallas_src>

<mosaic_0001>
module attributes {stable_mosaic.version = 11 : i64} {
  func.func @_eca_kernel(%arg0: i32, %arg1: memref<2x4x256xf32, #tpu.memory_space<vmem>>, %arg2: memref<4x4xf32, #tpu.memory_space<vmem>>, %arg3: memref<2x4x256xf32, #tpu.memory_space<vmem>>) attributes {dimension_semantics = [#tpu.dimension_semantics<parallel>], iteration_bounds = array<i64: 1>, scalar_prefetch = 0 : i64, scratch_operands = 0 : i64, tpu.core_type = #tpu.core_type<tc>, window_params = [{transform_indices = @transform_0, window_bounds = array<i64: 2, 4, 256>}, {pipeline_mode = #tpu.pipeline_mode<synchronous>, transform_indices = @transform_1, window_bounds = array<i64: 4, 4>}, {transform_indices = @transform_2, window_bounds = array<i64: 2, 4, 256>}]} {
    %c0 = arith.constant 0 : index
    %c0_0 = arith.constant 0 : index
    %c0_1 = arith.constant 0 : index
    %0 = vector.load %arg1[%c0, %c0_0, %c0_1] : memref<2x4x256xf32, #tpu.memory_space<vmem>>, vector<2x4x256xf32>
    %cst = arith.constant dense<0.000000e+00> : vector<2x4xf32>
    %1 = vector.multi_reduction <add>, %0, %cst [2] : vector<2x4x256xf32> to vector<2x4xf32>
    %cst_2 = arith.constant 2.560000e+02 : f32
    %2 = vector.broadcast %cst_2 : f32 to vector<2x4xf32>
    %3 = arith.divf %1, %2 : vector<2x4xf32>
    %c0_3 = arith.constant 0 : index
    %c0_4 = arith.constant 0 : index
    %4 = vector.load %arg2[%c0_3, %c0_4] : memref<4x4xf32, #tpu.memory_space<vmem>>, vector<4x4xf32>
    %cst_5 = arith.constant dense<0.000000e+00> : vector<2x4xf32>
    %5 = tpu.matmul %3, %4, %cst_5 {dimension_numbers = #tpu.dot_dimension_numbers<[1], [0], [0], [1], [0, 0, 1, 1], [], []>} : vector<2x4xf32>, vector<4x4xf32>, vector<2x4xf32> -> vector<2x4xf32>
    %6 = arith.negf %5 : vector<2x4xf32>
    %7 = math.exp %6 : vector<2x4xf32>
    %cst_6 = arith.constant 1.000000e+00 : f32
    %8 = vector.broadcast %cst_6 : f32 to vector<2x4xf32>
    %9 = arith.addf %8, %7 : vector<2x4xf32>
    %10 = arith.divf %8, %9 : vector<2x4xf32>
    %11 = vector.shape_cast %10 : vector<2x4xf32> to vector<2x4x1xf32>
    %12 = vector.broadcast %11 : vector<2x4x1xf32> to vector<2x4x256xf32>
    %13 = arith.mulf %0, %12 : vector<2x4x256xf32>
    %c0_7 = arith.constant 0 : index
    %c0_8 = arith.constant 0 : index
    %c0_9 = arith.constant 0 : index
    %14 = vector.load %arg3[%c0_7, %c0_8, %c0_9] : memref<2x4x256xf32, #tpu.memory_space<vmem>>, vector<2x4x256xf32>
    tpu.vector_store %arg3[%c0_7, %c0_8, %c0_9], %13 {strides = array<i32>} : memref<2x4x256xf32, #tpu.memory_space<vmem>>, vector<2x4x256xf32>,
    return
  }
  func.func @transform_0(%arg0: i32) -> (i32, i32, i32) {
    %c0_i32 = arith.constant 0 : i32
    %c0_i32_0 = arith.constant 0 : i32
    %c0_i32_1 = arith.constant 0 : i32
    return %arg0, %c0_i32, %c0_i32_0 : i32, i32, i32
  }
  func.func @transform_1(%arg0: i32) -> (i32, i32) {
    %c0_i32 = arith.constant 0 : i32
    %c0_i32_0 = arith.constant 0 : i32
    %c0_i32_1 = arith.constant 0 : i32
    return %c0_i32, %c0_i32_0 : i32, i32
  }
  func.func @transform_2(%arg0: i32) -> (i32, i32, i32) {
    %c0_i32 = arith.constant 0 : i32
    %c0_i32_0 = arith.constant 0 : i32
    %c0_i32_1 = arith.constant 0 : i32
    return %arg0, %c0_i32, %c0_i32_0 : i32, i32, i32
  }
}

</mosaic_0001>

<llo_original>
// kernel: tpu_custom_call.1
$region0: #{tpu_custom_call.1}
  #allocation0 [shape = 'u32[]', space=smem, size = 0x4, offset = 0x4, fixed_abs, tag = 'smem constant byte address 0x4 - core index']
  #allocation1 [shape = 'u32[72,128]{1,0:T(1,128)}', space=vmem, size = 0x9000, scoped, tag = 'internal scratch']
  %s0 = inlined_call_operand.hbm [shape: f32[2,4,256], index: 0, kind: input, shape index: {}]
  %s1 = inlined_call_operand.hbm [shape: f32[4,4], index: 1, kind: input, shape index: {}]
  %s2 = inlined_call_operand.hbm [shape: f32[2,4,256], index: 2, kind: output, shape index: {}]
  %s3 = sld [smem:[#allocation0]]
  $region26: #{tpu_custom_call.1} parent=0
    _
  %s5 = ssub.s32 1, %s3
  %s6 = scalar_select 0, %s5, %s3
  $region1: #{tpu_custom_call.1} parent=0
    #allocation2 [shape = 'u8[8192]{0}', space=vmem, size = 0x2000, scoped, tag = 'input window, operand 0, single buffered']
    #allocation3 [shape = 's32[1]{0}', space=sflag, size = 0x4, scoped, tag = 'scoped memory for tpu_custom_call.1']
    #allocation4 [shape = 's32[1]{0}', space=sflag, size = 0x4, scoped, tag = 'scoped memory for tpu_custom_call.1']
    #allocation5 [shape = 'u8[2048]{0}', space=vmem, size = 0x800, scoped, tag = 'input window, operand 1, single buffered']
    #allocation6 [shape = 's32[1]{0}', space=sflag, size = 0x4, scoped, tag = 'scoped memory for tpu_custom_call.1']
    #allocation7 [shape = 'u8[8192]{0}', space=vmem, size = 0x2000, scoped, tag = 'output window, operand 0, single buffered']
    %7 = vsyncpa [#allocation3], 0
    %8 = vsyncpa [#allocation6], 0
    %9 = vsyncpa [#allocation4], 0
    // Predicated region
    $region2: #{tpu_custom_call.1} parent=1 // pred_check
      _
    $region3: #{tpu_custom_call.1} parent=1 // pred_check_branch
      %11 = sbr.rel (0) target = $region5
    $region4: #{tpu_custom_call.1} parent=1 // pred_region
      %13 = vsyncadd [#allocation3], 0
      %s14 = sshll.u32 %s0, 4
      %s15 = int_to_ptr.hbm [resolvable:$true] %s14
      %s16 = sshll.u32 [#allocation2], 4
      %s17 = int_to_ptr.vmem [resolvable:$true] %s16
      %22 = dma.hbm_to_vmem [thread:$0]  %s15, 256, %s17, [#allocation3], 128, 128, 8
    $region5: #{tpu_custom_call.1} parent=1 // pred_fallthru
      _
    // Predicated region
    $region6: #{tpu_custom_call.1} parent=1 // pred_check
      _
    $region7: #{tpu_custom_call.1} parent=1 // pred_check_branch
      %24 = sbr.rel (0) target = $region9
    $region8: #{tpu_custom_call.1} parent=1 // pred_region
      %26 = vsyncadd [#allocation6], 0
      %s28 = sshll.u32 %s1, 4
      %s29 = int_to_ptr.hbm [resolvable:$true] %s28
      %s30 = sshll.u32 [#allocation5], 4
      %s31 = int_to_ptr.vmem [resolvable:$true] %s30
      %33 = dma.hbm_to_vmem [thread:$0]  %s29, 64, %s31, [#allocation6]
    $region9: #{tpu_custom_call.1} parent=1 // pred_fallthru
      _
    // Predicated region
    $region10: #{tpu_custom_call.1} parent=1 // pred_check
      _
    $region11: #{tpu_custom_call.1} parent=1 // pred_check_branch
      %35 = sbr.rel (0) target = $region13
    $region12: #{tpu_custom_call.1} parent=1 // pred_region
      %37 = dma.done [#allocation3], 256
    $region13: #{tpu_custom_call.1} parent=1 // pred_fallthru
      _
    // Predicated region
    $region14: #{tpu_custom_call.1} parent=1 // pred_check
      _
    $region15: #{tpu_custom_call.1} parent=1 // pred_check_branch
      %39 = sbr.rel (0) target = $region17
    $region16: #{tpu_custom_call.1} parent=1 // pred_region
      %41 = dma.done [#allocation6], 64
    $region17: #{tpu_custom_call.1} parent=1 // pred_fallthru
      _
    %v42 = vld [vmem:[#allocation2] sm:$0xff]
    %v43 = vld [vmem:[#allocation2 + $0x8] sm:$0xff]
    %46 = vst [vmem:[#allocation1] ss:$2 sm:$0xff] %v42
    %v47 = vld.sshfl [vmem:[#allocation1] sm:$0xff pattern:$0x75316420]
    %v48 = vld.sshfl [vmem:[#allocation1 + $0x8] sm:$0xff pattern:$0x75316420]
    %s49 = scalar_lea.vmem [#allocation1], 16
    %50 = vst [vmem:[%s49] ss:$2 sm:$0xff] %v43
    %v51 = vld.sshfl [vmem:[#allocation1 + $0x10] sm:$0xff pattern:$0x75316420]
    %v52 = vld.sshfl [vmem:[#allocation1 + $0x18] sm:$0xff pattern:$0x75316420]
    %vm57 = vcmask 1043456
    %v58 = vsel %vm57, %v47, 0.0
    %v59 = vsel %vm57, %v48, 0.0
    %v60 = vadd.f32 %v58, %v59
    %61 = vadd.xlane.f32.xlu0 %v60
    %v62 = vpop.xlane.xlu0 %61
    %v63 = vsel %vm57, %v51, 0.0
    %v64 = vsel %vm57, %v52, 0.0
    %v65 = vadd.f32 %v63, %v64
    %66 = vadd.xlane.f32.xlu0 %v65
    %v67 = vpop.xlane.xlu0 %66
    %v68 = vrcp.pop 256.0
    %v69 = vmul.f32 256.0, %v68
    %v70 = vsub.f32 1.0, %v69
    %v71 = vmul.f32 %v68, %v70
    %v72 = vadd.f32 %v68, %v71
    %vm73 = vweird.f32 %v68
    %v74 = vsel %vm73, %v68, %v72
    %v75 = vmul.f32 %v62, %v74
    %v76 = vmul.f32 %v67, %v74
    %v77 = vld [vmem:[#allocation5] sm:$0xf]
    %v80 = vlaneseq
    %v81 = vand.u32 %v80, 127
    %v82 = vperm.slane %v75, %v81
    %v83 = vperm.slane %v76, %v81
    %vm84 = vcmask 1041409
    %v85 = vsel %vm84, %v83, %v82
    %vm86 = vcmask 31744
    %v87 = vsel %vm86, %v85, 0
    %v90 = vsel %vm57, %v77, 0
    %92 = vmatpush.msra.mxu0 0.0
    %93 = vmatpush.msra.mxu0 0.0
    %94 = vmatpush.msra.mxu0 0.0
    %95 = vmatpush.msra.mxu0 0.0
    %96 = vmatpush.msra.mxu0 0.0
    %97 = vmatpush.msra.mxu0 0.0
    %98 = vmatpush.msra.mxu0 0.0
    %99 = vmatpush.msra.mxu0 0.0
    %100 = vmatpush.msra.mxu0 0.0
    %101 = vmatpush.msra.mxu0 0.0
    %102 = vmatpush.msra.mxu0 0.0
    %103 = vmatpush.msra.mxu0 0.0
    %104 = vmatpush.msra.mxu0 0.0
    %105 = vmatpush.msra.mxu0 0.0
    %106 = vmatpush.msra.mxu0 0.0
    %107 = vmatpush.msra.mxu0 %v90
    %108 = vmatmul.f32.gmra.mxu0 %v87
    %v109 = vpop.f32.mrf.mxu0
    %v110 = vadd.f32 0.0, %v109
    %111 = vdwg.mxu0
    %v112 = vxor.u32 %v110, 2147483648
    %v113 = vmul.f32 %v112, 1.442695
    %v114 = vpow.pop %v113
    %v115 = vadd.f32 %v114, 1.0
    %v116 = vrcp.pop %v115
    %v117 = vmul.f32 %v115, %v116
    %v118 = vsub.f32 1.0, %v117
    %v119 = vmul.f32 %v116, %v118
    %v120 = vadd.f32 %v116, %v119
    %vm121 = vweird.f32 %v115
    %vm122 = vweird.f32 %v116
    %vm123 = vmor %vm121, %vm122
    %v124 = vsel %vm123, %v116, %v120
    %v125 = vand.u32 2147483647, %v115
    %vm126 = vcmp.eq.f32.partialorder %v125, 8.507059e+37
    %v127 = vand.u32 %v115, 2147483648
    %v128 = vor.u32 1.1754944e-38, %v127
    %v129 = vsel %vm126, %v128, %v124
    %v130 = vmul.f32 1.0, %v129
    %v131 = vperm.slane %v130, 0
    %v132 = vlaneseq
    %v133 = vshrl.u32 %v132, 7
    %135 = vset.pattern.permute.xlu0 %v133
    %136 = vperm.xlu0 %135, %v131
    %v137 = vpop.permute.xlu0 %136
    %v138 = vperm.slane %v130, 1
    %v139 = vlaneseq
    %v140 = vshrl.u32 %v139, 7
    %142 = vset.pattern.permute.xlu0 %v140
    %143 = vperm.xlu0 %142, %v138
    %v144 = vpop.permute.xlu0 %143
    %v148 = vunpack.c.l.s4 839922192
    %v149 = vunpack.c.0.s8 %v148
    %v150 = vperm.slane %v137, %v149
    %v152 = vunpack.c.l.s4 839922192
    %v153 = vunpack.c.0.s8 %v152
    %v154 = vperm.slane %v144, %v153
    %v157 = vmul.f32 %v42, %v150
    %v158 = vmul.f32 %v43, %v154
    %159 = vst [vmem:[#allocation7] sm:$0xff] %v157
    %160 = vst [vmem:[#allocation7 + $0x8] sm:$0xff] %v158
    // Predicated region
    $region18: #{tpu_custom_call.1} parent=1 // pred_check
      _
    $region19: #{tpu_custom_call.1} parent=1 // pred_check_branch
      %162 = sbr.rel (0) target = $region21
    $region20: #{tpu_custom_call.1} parent=1 // pred_region
      %164 = vsyncadd [#allocation4], 0
      %s165 = sshll.u32 [#allocation7], 4
      %s166 = int_to_ptr.vmem [resolvable:$true] %s165
      %s167 = sshll.u32 %s2, 4
      %s168 = int_to_ptr.hbm [resolvable:$true] %s167
      %173 = dma.vmem_to_hbm [thread:$0]  %s166, 256, %s168, [#allocation4], 128, 128, 8
    $region21: #{tpu_custom_call.1} parent=1 // pred_fallthru
      _
    // Predicated region
    $region22: #{tpu_custom_call.1} parent=1 // pred_check
      _
    $region23: #{tpu_custom_call.1} parent=1 // pred_check_branch
      %175 = sbr.rel (0) target = $region25
    $region24: #{tpu_custom_call.1} parent=1 // pred_region
      %177 = dma.done [#allocation4], 256
    $region25: #{tpu_custom_call.1} parent=1 // pred_fallthru
      _
    %178 = vsyncpa [#allocation3], 1
    %179 = vsyncpa [#allocation6], 1
    %180 = vsyncpa [#allocation4], 1

</llo_original>
